<compile_context>
chip_gen: v6e
topology: v6e:2x2x1
jax: 0.10.0
libtpu: 0.0.40
codegen_flags: <defaults>
</compile_context>

<pallas_src>
import functools

import jax
import jax.numpy as jnp
from jax.experimental import pallas as pl
from jax.experimental.pallas import tpu as pltpu


def _round_up(x, m):
    return ((x + m - 1) // m) * m


def _fit_tile(size, max_tile, align, min_frac=4):
    """Pick a tile <= max_tile that is a multiple of `align`, preferring a clean divisor of the
    aligned size (avoids wrapper-side HBM pad copies) as long as it doesn't shrink the tile by
    more than `min_frac`x."""
    size_al = _round_up(size, align)
    t = min(_round_up(max_tile, align), size_al)
    if size_al % t == 0:
        return t
    lo = max(align, t // min_frac)
    for cand in range(t, lo - 1, -align):
        if size_al % cand == 0:
            return cand
    return t


def _vmem_budget_bytes():
    """Physical VMEM minus headroom for Mosaic internal scratch / semaphores."""
    try:
        cap = int(pltpu.get_tpu_info().vmem_capacity_bytes)
    except Exception:
        cap = 64 * 2**20  # conservative fallback: v7x has 64 MiB per TensorCore
    return (cap * 3) // 4  # ~48 MiB on v7x, ~96 MiB on v5e/v6e


def _make_kernel(fuse_bias, acc_in_output):
    """Build the (i, j, k) grid kernel:  O[i,j] += X[i,k] @ W_kn[k,j]  (+ bias at last k).

    acc_in_output=True  -> output dtype is f32: accumulate straight into the resident o_ref.
    acc_in_output=False -> f32 scratch accumulator, cast into o_ref at the last k step.
    """
    if acc_in_output:
        if fuse_bias:
            def kernel(x_ref, w_ref, b_ref, o_ref):
                k = pl.program_id(2)

                @pl.when(k == 0)
                def _():
                    o_ref[...] = jnp.zeros_like(o_ref)

                o_ref[...] += jnp.dot(x_ref[...], w_ref[...],
                                      preferred_element_type=jnp.float32)

                @pl.when(k == pl.num_programs(2) - 1)
                def _():
                    o_ref[...] += b_ref[...]
        else:
            def kernel(x_ref, w_ref, o_ref):
                k = pl.program_id(2)

                @pl.when(k == 0)
                def _():
                    o_ref[...] = jnp.zeros_like(o_ref)

                o_ref[...] += jnp.dot(x_ref[...], w_ref[...],
                                      preferred_element_type=jnp.float32)
    else:
        if fuse_bias:
            def kernel(x_ref, w_ref, b_ref, o_ref, acc_ref):
                k = pl.program_id(2)

                @pl.when(k == 0)
                def _():
                    acc_ref[...] = jnp.zeros_like(acc_ref)

                acc_ref[...] += jnp.dot(x_ref[...], w_ref[...],
                                        preferred_element_type=jnp.float32)

                @pl.when(k == pl.num_programs(2) - 1)
                def _():
                    o_ref[...] = (acc_ref[...] + b_ref[...]).astype(o_ref.dtype)
        else:
            def kernel(x_ref, w_ref, o_ref, acc_ref):
                k = pl.program_id(2)

                @pl.when(k == 0)
                def _():
                    acc_ref[...] = jnp.zeros_like(acc_ref)

                acc_ref[...] += jnp.dot(x_ref[...], w_ref[...],
                                        preferred_element_type=jnp.float32)

                @pl.when(k == pl.num_programs(2) - 1)
                def _():
                    o_ref[...] = acc_ref[...].astype(o_ref.dtype)
    return kernel


def prepare_row_parallel_weight(weight, compute_dtype=None):
    """One-time relayout of the module's [output_size, input_size_per_partition] weight into the
    kernel's [K, N] = [hidden, output] layout (lane-dense in N), in the MXU compute dtype.

    Call this once at parameter init / checkpoint load, NOT per forward step — doing the
    transpose+cast inside the forward doubles weight HBM traffic for every call.
    """
    if compute_dtype is None:
        compute_dtype = weight.dtype
    return jnp.asarray(weight).T.astype(compute_dtype)


@functools.partial(
    jax.jit,
    static_argnames=("skip_bias_add", "compute_dtype", "tm", "tn", "tk"),
)
def row_parallel_linear_forward(
    x,
    weight_kn,
    bias=None,
    *,
    skip_bias_add=False,
    compute_dtype=None,
    tm=512,
    tn=1024,
    tk=1024,
):
    """Forward of RowParallelLinear (world_size == 1, input_is_parallel=True).

    Args:
      x:         [S, B, H] activations.
      weight_kn: [H, O]    weight pre-transposed/cast by `prepare_row_parallel_weight`.
      bias:      [O] or None.
      skip_bias_add: if True, bias is returned instead of being fused.
      compute_dtype: dtype for the MXU matmul (e.g. jnp.bfloat16); accumulation is always f32.
                     None -> keep x.dtype.
    Returns:
      (output [S, B, O], output_bias)
    """
    S, B, H = x.shape
    K_w, N = weight_kn.shape
    assert H == K_w, "hidden dim mismatch (weight must be pre-transposed to [hidden, output])"

    M, K = S * B, H
    out_dtype = x.dtype
    if compute_dtype is None:
        compute_dtype = x.dtype
    compute_dtype = jnp.dtype(compute_dtype)

    # ---- tile selection -------------------------------------------------------------------
    # Shrink/fit tiles to the problem (divisor-preferring to avoid HBM pad copies) while keeping
    # (sublane, lane) alignment; big defaults keep large GEMMs above the HBM ridge point.
    tm = _fit_tile(M, tm, 16)
    tn = _fit_tile(N, tn, 128)
    tk = _fit_tile(K, tk, 128)

    Mp, Kp, Np = _round_up(M, tm), _round_up(K, tk), _round_up(N, tn)

    # v7x has 2 TensorCores per chip: ensure >= 2 blocks along a "parallel" axis when possible.
    if (Mp // tm) * (Np // tn) == 1:
        if tn % 256 == 0:
            tn //= 2
        elif tm % 32 == 0:
            tm //= 2
        Mp, Np = _round_up(M, tm), _round_up(N, tn)

    # ---- operand prep (no per-call weight relayout) ----------------------------------------
    x2d = x.reshape(M, K)
    if x2d.dtype != compute_dtype:
        x2d = x2d.astype(compute_dtype)
    w_kn = weight_kn
    if w_kn.dtype != compute_dtype:
        # No-op when the weight was prepared with prepare_row_parallel_weight(compute_dtype).
        w_kn = w_kn.astype(compute_dtype)

    # Zero-pad only when strictly needed (zeros in K contribute nothing to the reduction).
    if (Mp, Kp) != (M, K):
        x2d = jnp.pad(x2d, ((0, Mp - M), (0, Kp - K)))
    if (Kp, Np) != (K, N):
        w_kn = jnp.pad(w_kn, ((0, Kp - K), (0, Np - N)))

    fuse_bias = (bias is not None) and (not skip_bias_add)
    if fuse_bias:
        bias_fused = bias.reshape(1, N).astype(jnp.float32)
        if Np != N:
            bias_fused = jnp.pad(bias_fused, ((0, 0), (0, Np - N)))

    acc_in_output = jnp.dtype(out_dtype) == jnp.dtype(jnp.float32)

    grid = (Mp // tm, Np // tn, Kp // tk)

    in_specs = [
        pl.BlockSpec((tm, tk), lambda i, j, k: (i, k)),  # x tile
        pl.BlockSpec((tk, tn), lambda i, j, k: (k, j)),  # weight tile ([K, N] layout)
    ]
    operands = [x2d, w_kn]
    if fuse_bias:
        in_specs.append(pl.BlockSpec((1, tn), lambda i, j, k: (0, j)))  # bias tile
        operands.append(bias_fused)

    scratch_shapes = [] if acc_in_output else [pltpu.VMEM((tm, tn), jnp.float32)]

    # ---- VMEM budget & cost hint ------------------------------------------------------------
    cbytes = jnp.dtype(compute_dtype).itemsize
    obytes = jnp.dtype(out_dtype).itemsize
    footprint = 2 * (tm * tk + tk * tn) * cbytes      # double-buffered x / w
    footprint += 2 * tm * tn * obytes                 # double-buffered output
    if not acc_in_output:
        footprint += tm * tn * 4                      # f32 accumulator scratch
    if fuse_bias:
        footprint += 2 * tn * 4                       # double-buffered bias
    budget = _vmem_budget_bytes()
    vmem_limit = int(min(budget, max(32 * 2**20, footprint + (8 << 20))))
    vmem_limit = int(max(vmem_limit, footprint + (2 << 20)))

    n_i, n_j = grid[0], grid[1]
    bytes_accessed = (
        Mp * Kp * cbytes * n_j          # X is re-read once per N-block
        + Kp * Np * cbytes * n_i        # W is re-read once per M-block
        + Mp * Np * obytes
        + (Np * 4 if fuse_bias else 0)
    )
    cost = pl.CostEstimate(flops=2 * Mp * Np * Kp, transcendentals=0,
                           bytes_accessed=bytes_accessed)

    out2d = pl.pallas_call(
        _make_kernel(fuse_bias, acc_in_output),
        out_shape=jax.ShapeDtypeStruct((Mp, Np), out_dtype),
        grid_spec=pltpu.PrefetchScalarGridSpec(
            num_scalar_prefetch=0,
            grid=grid,
            in_specs=in_specs,
            out_specs=pl.BlockSpec((tm, tn), lambda i, j, k: (i, j)),
            scratch_shapes=scratch_shapes,
        ),
        compiler_params=pltpu.CompilerParams(
            dimension_semantics=("parallel", "parallel", "arbitrary"),
            vmem_limit_bytes=vmem_limit,
        ),
        cost_estimate=cost,
    )(*operands)

    if (Mp, Np) != (M, N):
        out2d = out2d[:M, :N]
    output = out2d.reshape(S, B, N)
    output_bias = bias if skip_bias_add else None
    return output, output_bias


def _reference_forward(x, weight_oh, bias):
    # torch.matmul(total_input, weight.t()) (+ bias)
    out = jnp.einsum("sbh,oh->sbo", x, weight_oh)
    return out + bias if bias is not None else out


if __name__ == "__main__":
    # Module hyperparameters (world_size = 1 -> input_size_per_partition == input_size)
    input_size = 256      # hidden of the input
    output_size = 128     # output hidden
    seq, batch = 8, 2

    key = jax.random.PRNGKey(0)
    kx, kw, kb = jax.random.split(key, 3)

    x = jax.random.normal(kx, (seq, batch, input_size), dtype=jnp.float32)
    weight = (jax.random.normal(kw, (output_size, input_size), dtype=jnp.float32)
              * (1.0 / jnp.sqrt(input_size)))
    bias = jax.random.normal(kb, (output_size,), dtype=jnp.float32) * 0.01

    ref = _reference_forward(x, weight, bias)
    ref_nobias = _reference_forward(x, weight, None)

    # One-time weight relayout (parameter-init time), not per forward call.
    w_kn_f32 = prepare_row_parallel_weight(weight)                  # [K, N] f32
    w_kn_bf16 = prepare_row_parallel_weight(weight, jnp.bfloat16)   # [K, N] bf16

    # 1) f32 path (bit-faithful to module dtype), skip_bias_add=False: bias fused into output.
    out, out_bias = row_parallel_linear_forward(x, w_kn_f32, bias)
    out = jax.block_until_ready(out)
    assert out.shape == (seq, batch, output_size)
    assert out_bias is None
    assert jnp.allclose(out, ref, atol=1e-4, rtol=1e-4), "f32 path mismatch vs reference"

    # 2) bf16-compute path (MXU-native, f32 accumulation) -> looser tolerance.
    out_bf16, _ = row_parallel_linear_forward(x, w_kn_bf16, bias, compute_dtype=jnp.bfloat16)
    out_bf16 = jax.block_until_ready(out_bf16)
    assert jnp.allclose(out_bf16, ref, atol=5e-2, rtol=5e-2), "bf16 path mismatch vs reference"

    # 3) skip_bias_add=True path: bias returned, not added (specialized no-bias kernel).
    out_skip, out_bias_skip = row_parallel_linear_forward(x, w_kn_f32, bias, skip_bias_add=True)
    out_skip = jax.block_until_ready(out_skip)
    assert out_bias_skip is not None
    assert jnp.allclose(out_skip, ref_nobias, atol=1e-4, rtol=1e-4), "skip_bias_add path mismatch"

    # 4) bias=None path (module constructed with bias=False).
    out_nb, nb = row_parallel_linear_forward(x, w_kn_f32, None)
    out_nb = jax.block_until_ready(out_nb)
    assert nb is None
    assert jnp.allclose(out_nb, ref_nobias, atol=1e-4, rtol=1e-4), "no-bias path mismatch"

    print("KERNEL_OK")
</pallas_src>

<mosaic_0001>
module attributes {stable_mosaic.version = 11 : i64} {
  func.func @kernel(%arg0: i32, %arg1: i32, %arg2: i32, %arg3: memref<16x256xf32, #tpu.memory_space<vmem>>, %arg4: memref<256x128xf32, #tpu.memory_space<vmem>>, %arg5: memref<1x128xf32, #tpu.memory_space<vmem>>, %arg6: memref<16x128xf32, #tpu.memory_space<vmem>>) attributes {dimension_semantics = [#tpu.dimension_semantics<parallel>, #tpu.dimension_semantics<parallel>, #tpu.dimension_semantics<arbitrary>], iteration_bounds = array<i64: 1, 1, 1>, scalar_prefetch = 0 : i64, scratch_operands = 0 : i64, tpu.core_type = #tpu.core_type<tc>, window_params = [{transform_indices = @transform_0, window_bounds = array<i64: 16, 256>}, {transform_indices = @transform_1, window_bounds = array<i64: 256, 128>}, {transform_indices = @transform_2, window_bounds = array<i64: 1, 128>}, {transform_indices = @transform_3, window_bounds = array<i64: 16, 128>}]} {
    %c0_i32 = arith.constant 0 : i32
    %0 = arith.cmpi eq, %arg2, %c0_i32 : i32
    %1 = arith.extui %0 : i1 to i32
    %c0_i32_0 = arith.constant 0 : i32
    %2 = arith.cmpi ne, %1, %c0_i32_0 : i32
    scf.if %2 {
      %cst_10 = arith.constant 0.000000e+00 : f32
      %12 = vector.broadcast %cst_10 : f32 to vector<16x128xf32>
      %c0_11 = arith.constant 0 : index
      %c0_12 = arith.constant 0 : index
      %13 = vector.load %arg6[%c0_11, %c0_12] : memref<16x128xf32, #tpu.memory_space<vmem>>, vector<16x128xf32>
      tpu.vector_store %arg6[%c0_11, %c0_12], %12 {strides = array<i32>} : memref<16x128xf32, #tpu.memory_space<vmem>>, vector<16x128xf32>,
    } else {
    }
    %c0 = arith.constant 0 : index
    %c0_1 = arith.constant 0 : index
    %3 = vector.load %arg6[%c0, %c0_1] : memref<16x128xf32, #tpu.memory_space<vmem>>, vector<16x128xf32>
    %c0_2 = arith.constant 0 : index
    %c0_3 = arith.constant 0 : index
    %4 = vector.load %arg3[%c0_2, %c0_3] : memref<16x256xf32, #tpu.memory_space<vmem>>, vector<16x256xf32>
    %c0_4 = arith.constant 0 : index
    %c0_5 = arith.constant 0 : index
    %5 = vector.load %arg4[%c0_4, %c0_5] : memref<256x128xf32, #tpu.memory_space<vmem>>, vector<256x128xf32>
    %cst = arith.constant dense<0.000000e+00> : vector<16x128xf32>
    %6 = tpu.matmul %4, %5, %cst {dimension_numbers = #tpu.dot_dimension_numbers<[1], [0], [0], [1], [0, 0, 1, 1], [], []>} : vector<16x256xf32>, vector<256x128xf32>, vector<16x128xf32> -> vector<16x128xf32>
    %7 = arith.addf %3, %6 : vector<16x128xf32>
    %c0_6 = arith.constant 0 : index
    %c0_7 = arith.constant 0 : index
    %8 = vector.load %arg6[%c0_6, %c0_7] : memref<16x128xf32, #tpu.memory_space<vmem>>, vector<16x128xf32>
    tpu.vector_store %arg6[%c0_6, %c0_7], %7 {strides = array<i32>} : memref<16x128xf32, #tpu.memory_space<vmem>>, vector<16x128xf32>,
    %c0_i32_8 = arith.constant 0 : i32
    %9 = arith.cmpi eq, %arg2, %c0_i32_8 : i32
    %10 = arith.extui %9 : i1 to i32
    %c0_i32_9 = arith.constant 0 : i32
    %11 = arith.cmpi ne, %10, %c0_i32_9 : i32
    scf.if %11 {
      %c0_10 = arith.constant 0 : index
      %c0_11 = arith.constant 0 : index
      %12 = vector.load %arg6[%c0_10, %c0_11] : memref<16x128xf32, #tpu.memory_space<vmem>>, vector<16x128xf32>
      %c0_12 = arith.constant 0 : index
      %c0_13 = arith.constant 0 : index
      %13 = vector.load %arg5[%c0_12, %c0_13] : memref<1x128xf32, #tpu.memory_space<vmem>>, vector<1x128xf32>
      %14 = vector.broadcast %13 : vector<1x128xf32> to vector<16x128xf32>
      %15 = arith.addf %12, %14 : vector<16x128xf32>
      %c0_14 = arith.constant 0 : index
      %c0_15 = arith.constant 0 : index
      %16 = vector.load %arg6[%c0_14, %c0_15] : memref<16x128xf32, #tpu.memory_space<vmem>>, vector<16x128xf32>
      tpu.vector_store %arg6[%c0_14, %c0_15], %15 {strides = array<i32>} : memref<16x128xf32, #tpu.memory_space<vmem>>, vector<16x128xf32>,
    } else {
    }
    return
  }
  func.func @transform_0(%arg0: i32, %arg1: i32, %arg2: i32) -> (i32, i32) {
    %c0_i32 = arith.constant 0 : i32
    return %arg0, %arg2 : i32, i32
  }
  func.func @transform_1(%arg0: i32, %arg1: i32, %arg2: i32) -> (i32, i32) {
    %c0_i32 = arith.constant 0 : i32
    return %arg2, %arg1 : i32, i32
  }
  func.func @transform_2(%arg0: i32, %arg1: i32, %arg2: i32) -> (i32, i32) {
    %c0_i32 = arith.constant 0 : i32
    %c0_i32_0 = arith.constant 0 : i32
    return %c0_i32, %arg1 : i32, i32
  }
  func.func @transform_3(%arg0: i32, %arg1: i32, %arg2: i32) -> (i32, i32) {
    %c0_i32 = arith.constant 0 : i32
    return %arg0, %arg1 : i32, i32
  }
}

</mosaic_0001>

<llo_original>
// kernel: row_parallel_linear_forward.1
$region0: #{row_parallel_linear_forward.1}
  #allocation0 [shape = 'u32[]', space=smem, size = 0x4, offset = 0x4, fixed_abs, tag = 'smem constant byte address 0x4 - core index']
  #allocation1 [shape = 'u32[144,128]{1,0:T(1,128)}', space=vmem, size = 0x12000, scoped, tag = 'internal scratch']
  %s0 = inlined_call_operand.vmem [shape: f32[16,256], index: 0, kind: input, shape index: {}]
  %s1 = inlined_call_operand.hbm [shape: f32[256,128], index: 1, kind: input, shape index: {}]
  %s2 = inlined_call_operand.vmem [shape: f32[1,128], index: 2, kind: input, shape index: {}]
  %s3 = inlined_call_operand.hbm [shape: f32[16,128], index: 3, kind: output, shape index: {}]
  %s4 = sld [smem:[#allocation0]]
  $region34: #{row_parallel_linear_forward.1} parent=0
    _
  %s6 = ssub.s32 1, %s4
  %s7 = scalar_select 0, %s6, %s4
  $region1: #{row_parallel_linear_forward.1} parent=0
    #allocation2 [shape = 'u8[131072]{0}', space=vmem, size = 0x20000, scoped, tag = 'input window, operand 1, single buffered']
    #allocation3 [shape = 's32[1]{0}', space=sflag, size = 0x4, scoped, tag = 'scoped memory for row_parallel_linear_forward.1']
    #allocation4 [shape = 's32[1]{0}', space=sflag, size = 0x4, scoped, tag = 'scoped memory for row_parallel_linear_forward.1']
    #allocation5 [shape = 'u8[8192]{0}', space=vmem, size = 0x2000, scoped, tag = 'output window, operand 0, single buffered']
    %8 = vsyncpa [#allocation3], 0
    %9 = vsyncpa [#allocation4], 0
    // Predicated region
    $region2: #{row_parallel_linear_forward.1} parent=1 // pred_check
      _
    $region3: #{row_parallel_linear_forward.1} parent=1 // pred_check_branch
      %11 = sbr.rel (0) target = $region5
    $region4: #{row_parallel_linear_forward.1} parent=1 // pred_region
      _
    $region5: #{row_parallel_linear_forward.1} parent=1 // pred_fallthru
      _
    // Predicated region
    $region6: #{row_parallel_linear_forward.1} parent=1 // pred_check
      _
    $region7: #{row_parallel_linear_forward.1} parent=1 // pred_check_branch
      %13 = sbr.rel (0) target = $region9
    $region8: #{row_parallel_linear_forward.1} parent=1 // pred_region
      %s15 = ssub.s32 4096, 4096
      %16 = vsyncadd [#allocation3], %s15
      %s17 = sshll.u32 [#allocation2], 4
      %s18 = int_to_ptr.vmem [resolvable:$true] %s17
      %23 = dma.hbm_to_vmem [thread:$0]  %s1, 4096, %s18, [#allocation3], 128, 128, 8
    $region9: #{row_parallel_linear_forward.1} parent=1 // pred_fallthru
      _
    // Predicated region
    $region10: #{row_parallel_linear_forward.1} parent=1 // pred_check
      _
    $region11: #{row_parallel_linear_forward.1} parent=1 // pred_check_branch
      %25 = sbr.rel (0) target = $region13
    $region12: #{row_parallel_linear_forward.1} parent=1 // pred_region
      _
    $region13: #{row_parallel_linear_forward.1} parent=1 // pred_fallthru
      _
    // Predicated region
    $region14: #{row_parallel_linear_forward.1} parent=1 // pred_check
      _
    $region15: #{row_parallel_linear_forward.1} parent=1 // pred_check_branch
      %27 = sbr.rel (0) target = $region17
    $region16: #{row_parallel_linear_forward.1} parent=1 // pred_region
      %28 = dma.done [#allocation3], 4096
    $region17: #{row_parallel_linear_forward.1} parent=1 // pred_fallthru
      _
    %p29 = scmp.eq.s32.totalorder 0, 0
    // Predicated region
    $region18: #{row_parallel_linear_forward.1} parent=1 // pred_check
      %p30 = pneg %p29
    $region19: #{row_parallel_linear_forward.1} parent=1 // pred_check_branch
      %32 = sbr.rel (%p30) target = $region21
    $region20: #{row_parallel_linear_forward.1} parent=1 // pred_region
      %33 = vst [vmem:[#allocation5] sm:$0xff] 0.0
      %34 = vst [vmem:[#allocation5 + $0x8] sm:$0xff] 0.0
    $region21: #{row_parallel_linear_forward.1} parent=1 // pred_fallthru
      _
    %v35 = vld [vmem:[#allocation5] sm:$0xff]
    %v36 = vld [vmem:[#allocation5 + $0x8] sm:$0xff]
    %v37 = vld [vmem:[%s0] sm:$0xff]
    %v38 = vld [vmem:[%s0 + $0x8] sm:$0xff]
    %v39 = vld [vmem:[%s0 + $0x10] sm:$0xff]
    %v40 = vld [vmem:[%s0 + $0x18] sm:$0xff]
    %v41 = vld [vmem:[#allocation2] sm:$0xff]
    %v42 = vld [vmem:[#allocation2 + $0x8] sm:$0xff]
    %v43 = vld [vmem:[#allocation2 + $0x10] sm:$0xff]
    %v44 = vld [vmem:[#allocation2 + $0x18] sm:$0xff]
    %v45 = vld [vmem:[#allocation2 + $0x20] sm:$0xff]
    %v46 = vld [vmem:[#allocation2 + $0x28] sm:$0xff]
    %v47 = vld [vmem:[#allocation2 + $0x30] sm:$0xff]
    %v48 = vld [vmem:[#allocation2 + $0x38] sm:$0xff]
    %v49 = vld [vmem:[#allocation2 + $0x40] sm:$0xff]
    %v50 = vld [vmem:[#allocation2 + $0x48] sm:$0xff]
    %v51 = vld [vmem:[#allocation2 + $0x50] sm:$0xff]
    %v52 = vld [vmem:[#allocation2 + $0x58] sm:$0xff]
    %v53 = vld [vmem:[#allocation2 + $0x60] sm:$0xff]
    %v54 = vld [vmem:[#allocation2 + $0x68] sm:$0xff]
    %v55 = vld [vmem:[#allocation2 + $0x70] sm:$0xff]
    %v56 = vld [vmem:[#allocation2 + $0x78] sm:$0xff]
    %v57 = vld [vmem:[#allocation2 + $0x80] sm:$0xff]
    %v58 = vld [vmem:[#allocation2 + $0x88] sm:$0xff]
    %v59 = vld [vmem:[#allocation2 + $0x90] sm:$0xff]
    %v60 = vld [vmem:[#allocation2 + $0x98] sm:$0xff]
    %v61 = vld [vmem:[#allocation2 + $0xa0] sm:$0xff]
    %v62 = vld [vmem:[#allocation2 + $0xa8] sm:$0xff]
    %v63 = vld [vmem:[#allocation2 + $0xb0] sm:$0xff]
    %v64 = vld [vmem:[#allocation2 + $0xb8] sm:$0xff]
    %v65 = vld [vmem:[#allocation2 + $0xc0] sm:$0xff]
    %v66 = vld [vmem:[#allocation2 + $0xc8] sm:$0xff]
    %v67 = vld [vmem:[#allocation2 + $0xd0] sm:$0xff]
    %v68 = vld [vmem:[#allocation2 + $0xd8] sm:$0xff]
    %v69 = vld [vmem:[#allocation2 + $0xe0] sm:$0xff]
    %v70 = vld [vmem:[#allocation2 + $0xe8] sm:$0xff]
    %v71 = vld [vmem:[#allocation2 + $0xf0] sm:$0xff]
    %v72 = vld [vmem:[#allocation2 + $0xf8] sm:$0xff]
    %73 = vmatprep.subr.mxu0 0.0
    %74 = vmatpush1.msra.mxu0 %v56
    %75 = vmatprep.subr.mxu0 0.0
    %76 = vmatpush1.msra.mxu0 %v55
    %77 = vmatprep.subr.mxu0 0.0
    %78 = vmatpush1.msra.mxu0 %v54
    %79 = vmatprep.subr.mxu0 0.0
    %80 = vmatpush1.msra.mxu0 %v53
    %81 = vmatprep.subr.mxu0 0.0
    %82 = vmatpush1.msra.mxu0 %v52
    %83 = vmatprep.subr.mxu0 0.0
    %84 = vmatpush1.msra.mxu0 %v51
    %85 = vmatprep.subr.mxu0 0.0
    %86 = vmatpush1.msra.mxu0 %v50
    %87 = vmatprep.subr.mxu0 0.0
    %88 = vmatpush1.msra.mxu0 %v49
    %89 = vmatprep.subr.mxu0 0.0
    %90 = vmatpush1.msra.mxu0 %v48
    %91 = vmatprep.subr.mxu0 0.0
    %92 = vmatpush1.msra.mxu0 %v47
    %93 = vmatprep.subr.mxu0 0.0
    %94 = vmatpush1.msra.mxu0 %v46
    %95 = vmatprep.subr.mxu0 0.0
    %96 = vmatpush1.msra.mxu0 %v45
    %97 = vmatprep.subr.mxu0 0.0
    %98 = vmatpush1.msra.mxu0 %v44
    %99 = vmatprep.subr.mxu0 0.0
    %100 = vmatpush1.msra.mxu0 %v43
    %101 = vmatprep.subr.mxu0 0.0
    %102 = vmatpush1.msra.mxu0 %v42
    %103 = vmatprep.subr.mxu0 0.0
    %104 = vmatpush1.msra.mxu0 %v41
    %105 = vmatprep.subr.mxu0 0.0
    %106 = vmatpush2.msra.mxu0 %v72
    %107 = vmatprep.subr.mxu0 0.0
    %108 = vmatpush2.msra.mxu0 %v71
    %109 = vmatprep.subr.mxu0 0.0
    %110 = vmatpush2.msra.mxu0 %v70
    %111 = vmatprep.subr.mxu0 0.0
    %112 = vmatpush2.msra.mxu0 %v69
    %113 = vmatprep.subr.mxu0 0.0
    %114 = vmatpush2.msra.mxu0 %v68
    %115 = vmatprep.subr.mxu0 0.0
    %116 = vmatpush2.msra.mxu0 %v67
    %117 = vmatprep.subr.mxu0 0.0
    %118 = vmatpush2.msra.mxu0 %v66
    %119 = vmatprep.subr.mxu0 0.0
    %120 = vmatpush2.msra.mxu0 %v65
    %121 = vmatprep.subr.mxu0 0.0
    %122 = vmatpush2.msra.mxu0 %v64
    %123 = vmatprep.subr.mxu0 0.0
    %124 = vmatpush2.msra.mxu0 %v63
    %125 = vmatprep.subr.mxu0 0.0
    %126 = vmatpush2.msra.mxu0 %v62
    %127 = vmatprep.subr.mxu0 0.0
    %128 = vmatpush2.msra.mxu0 %v61
    %129 = vmatprep.subr.mxu0 0.0
    %130 = vmatpush2.msra.mxu0 %v60
    %131 = vmatprep.subr.mxu0 0.0
    %132 = vmatpush2.msra.mxu0 %v59
    %133 = vmatprep.subr.mxu0 0.0
    %134 = vmatpush2.msra.mxu0 %v58
    %135 = vmatprep.subr.mxu0 0.0
    %136 = vmatpush2.msra.mxu0 %v57
    %137 = vmatprep.mubr.f32.mxu0 %v38
    %138 = vmatmul.mubr.f32.gmra.mxu0 %v37
    %v139 = vpop.f32.mrf.mxu0
    %v140 = vadd.f32 0.0, %v139
    %v141 = vpop.f32.mrf.mxu0
    %142 = vmatprep.mubr.f32.mxu0 %v40
    %143 = vmatmul.mubr.f32.gmra.mxu0 %v39
    %v144 = vpop.f32.mrf.mxu0
    %v145 = vadd.f32 0.0, %v144
    %v146 = vpop.f32.mrf.mxu0
    %147 = vdwg.mxu0
    %v148 = vadd.f32 %v35, %v140
    %v149 = vadd.f32 %v36, %v145
    %150 = vst [vmem:[#allocation5] sm:$0xff] %v148
    %151 = vst [vmem:[#allocation5 + $0x8] sm:$0xff] %v149
    // Predicated region
    $region22: #{row_parallel_linear_forward.1} parent=1 // pred_check
      %p152 = pneg %p29
    $region23: #{row_parallel_linear_forward.1} parent=1 // pred_check_branch
      %154 = sbr.rel (%p152) target = $region25
    $region24: #{row_parallel_linear_forward.1} parent=1 // pred_region
      %v155 = vld [vmem:[#allocation5] sm:$0xff]
      %v156 = vld [vmem:[#allocation5 + $0x8] sm:$0xff]
      %v157 = vld [vmem:[%s2] sm:$0x1]
      %v159 = vlaneseq
      %v160 = vshrl.u32 %v159, 7
      %v161 = vsub.s32 0, %v160
      %v162 = vrot.slane %v157, %v161
      %v164 = vadd.f32 %v155, %v162
      %v165 = vadd.f32 %v156, %v162
      %166 = vst [vmem:[#allocation5] sm:$0xff] %v164
      %167 = vst [vmem:[#allocation5 + $0x8] sm:$0xff] %v165
    $region25: #{row_parallel_linear_forward.1} parent=1 // pred_fallthru
      _
    // Predicated region
    $region26: #{row_parallel_linear_forward.1} parent=1 // pred_check
      _
    $region27: #{row_parallel_linear_forward.1} parent=1 // pred_check_branch
      %169 = sbr.rel (0) target = $region29
    $region28: #{row_parallel_linear_forward.1} parent=1 // pred_region
      %s171 = ssub.s32 256, 256
      %172 = vsyncadd [#allocation4], %s171
      %s173 = sshll.u32 [#allocation5], 4
      %s174 = int_to_ptr.vmem [resolvable:$true] %s173
      %179 = dma.vmem_to_hbm [thread:$0]  %s174, 256, %s3, [#allocation4], 128, 128, 8
    $region29: #{row_parallel_linear_forward.1} parent=1 // pred_fallthru
      _
    // Predicated region
    $region30: #{row_parallel_linear_forward.1} parent=1 // pred_check
      _
    $region31: #{row_parallel_linear_forward.1} parent=1 // pred_check_branch
      %181 = sbr.rel (0) target = $region33
    $region32: #{row_parallel_linear_forward.1} parent=1 // pred_region
      %182 = dma.done [#allocation4], 256
    $region33: #{row_parallel_linear_forward.1} parent=1 // pred_fallthru
      _
    %183 = vsyncpa [#allocation3], 1
    %184 = vsyncpa [#allocation4], 1

</llo_original>
